<compile_context>
chip_gen: v7x
topology: tpu7x:2x2x1
jax: 0.10.0
libtpu: 0.0.40
codegen_flags: <defaults>
</compile_context>

<pallas_src>
import functools

import jax
import jax.numpy as jnp
import numpy as np
from jax import lax
from jax.experimental import pallas as pl
from jax.experimental.pallas import tpu as pltpu


# ----------------------------------------------------------------------------- kernels
def _rms_fused_kernel(count_ref, obs_ref, mean_ref, var_ref,
                      out_ref, new_mean_ref, new_var_ref,
                      *, epsilon: float, batch_count: int):
    """Fused path: full batch in one (B, tile_d) block; grid over feature tiles."""
    # --- scalar-unit math (count lives in SMEM) -------------------------------
    count = count_ref[0]                       # f32 scalar
    bc = jnp.float32(batch_count)
    tot = count + bc
    rtot = 1.0 / tot
    coef_b = bc * rtot                         # batch_count / tot
    coef_d = count * bc * rtot                 # count * batch_count / tot

    # --- vector work on the current (B, tile_d) feature tile ------------------
    obs = obs_ref[...].astype(jnp.float32)                      # (B, tD)
    mean = mean_ref[...]                                        # (1, tD)
    var = var_ref[...]                                          # (1, tD)

    batch_mean = jnp.mean(obs, axis=0, keepdims=True)           # (1, tD)
    centered = obs - batch_mean
    batch_var = jnp.mean(centered * centered, axis=0, keepdims=True)

    # Chan/Welford moment merge (update_mean_var_count_from_moments)
    delta = batch_mean - mean
    new_mean = mean + delta * coef_b
    m2 = var * count + batch_var * bc + (delta * delta) * coef_d
    new_var = m2 * rtot

    new_mean_ref[...] = new_mean
    new_var_ref[...] = new_var

    # Normalize with the UPDATED stats: (1, tD) rsqrt on the EUP slot, one (B, tD) mul.
    inv_std = lax.rsqrt(new_var + jnp.float32(epsilon))
    out_ref[...] = ((obs - new_mean) * inv_std).astype(out_ref.dtype)


def _rms_moments_kernel(count_ref, obs_ref, mean_ref, var_ref,
                        new_mean_ref, new_var_ref,
                        sum_ref, sq_ref,
                        *, batch_count: int):
    """Batch-tiled fallback, pass 1: accumulate per-feature sum / sum-of-squares over
    batch tiles (reduction grid axis), then Chan-merge into the running stats."""
    b = pl.program_id(1)
    nb = pl.num_programs(1)
    tb = obs_ref.shape[0]

    @pl.when(b == 0)
    def _():
        sum_ref[...] = jnp.zeros_like(sum_ref)
        sq_ref[...] = jnp.zeros_like(sq_ref)

    x = obs_ref[...].astype(jnp.float32)                        # (tb, tD)
    # Mask garbage rows of the ragged last batch tile.
    rows_left = jnp.int32(batch_count) - b * tb
    row_idx = lax.broadcasted_iota(jnp.int32, x.shape, 0)
    x = jnp.where(row_idx < rows_left, x, 0.0)
    sum_ref[...] += jnp.sum(x, axis=0, keepdims=True)
    sq_ref[...] += jnp.sum(x * x, axis=0, keepdims=True)

    @pl.when(b == nb - 1)
    def _():
        count = count_ref[0]
        bc = jnp.float32(batch_count)
        tot = count + bc
        rtot = 1.0 / tot
        inv_bc = 1.0 / bc
        batch_mean = sum_ref[...] * inv_bc
        batch_var = jnp.maximum(sq_ref[...] * inv_bc - batch_mean * batch_mean, 0.0)
        mean = mean_ref[...]
        var = var_ref[...]
        delta = batch_mean - mean
        new_mean_ref[...] = mean + delta * (bc * rtot)
        m2 = var * count + batch_var * bc + (delta * delta) * (count * bc * rtot)
        new_var_ref[...] = m2 * rtot


def _normalize_kernel(obs_ref, mean_ref, var_ref, out_ref, *, epsilon: float):
    """Pure elementwise normalization with given stats (batch + feature tiled)."""
    inv_std = lax.rsqrt(var_ref[...] + jnp.float32(epsilon))    # (1, tD) on EUP
    out_ref[...] = ((obs_ref[...].astype(jnp.float32) - mean_ref[...]) * inv_std
                    ).astype(out_ref.dtype)


# ----------------------------------------------------------------------------- helpers
def _round_up(x, m):
    return (x + m - 1) // m * m


def _cdiv(a, b):
    return -(-a // b)


def _default_vmem_budget():
    """Blocked-operand VMEM budget (bytes), generation aware."""
    try:
        cap = int(pltpu.get_tpu_info().vmem_capacity_bytes)
    except Exception:
        cap = 64 << 20                          # conservative fallback
    if cap >= (100 << 20):                      # v5e / v6e: 128 MiB physical VMEM
        return 48 << 20
    return 24 << 20                             # v7x: 64 MiB physical VMEM


def _normalize_call(obs, mean2d, var2d, epsilon, tb, tile_d, vmem_limit):
    B, D = obs.shape
    grid = (_cdiv(D, tile_d), _cdiv(B, tb))
    kernel = functools.partial(_normalize_kernel, epsilon=float(epsilon))
    return pl.pallas_call(
        kernel,
        out_shape=jax.ShapeDtypeStruct((B, D), obs.dtype),
        grid=grid,
        in_specs=[
            pl.BlockSpec((tb, tile_d), lambda j, b: (b, j)),
            pl.BlockSpec((1, tile_d), lambda j, b: (0, j)),
            pl.BlockSpec((1, tile_d), lambda j, b: (0, j)),
        ],
        out_specs=pl.BlockSpec((tb, tile_d), lambda j, b: (b, j)),
        compiler_params=pltpu.CompilerParams(
            dimension_semantics=("parallel", "parallel"),
            vmem_limit_bytes=vmem_limit),
    )(obs, mean2d, var2d)


# ----------------------------------------------------------------------------- wrapper
@functools.partial(jax.jit,
                   static_argnames=("epsilon", "update", "vmem_budget_bytes", "batch_tile"))
def running_mean_std_forward(obs, running_mean, running_var, count,
                             epsilon=1e-8, update=True,
                             vmem_budget_bytes=None, batch_tile=None):
    """obs: (B, D); running_mean/var: (D,) f32; count: scalar f32.

    Returns (normalized_obs, new_running_mean, new_running_var, new_count),
    equivalent to RunningMeanStd.forward(obs, update=update).
    """
    B, D = obs.shape
    itemsize = jnp.dtype(obs.dtype).itemsize

    budget = int(vmem_budget_bytes) if vmem_budget_bytes is not None else _default_vmem_budget()
    vmem_limit = int(min(max(2 * budget, 32 << 20), 96 << 20))

    d128 = _round_up(D, 128)
    # Cap the lane tile so the feature grid has >= 2 steps whenever D allows it
    # (work for both v7x TensorCores, keeps the pipeline engaged).
    cap2 = _round_up(_cdiv(D, 2), 128) if d128 >= 256 else d128
    # Double-buffered in+out blocks plus the in-kernel f32 temporaries, per element/column.
    per_elem = 4 * itemsize + 8

    mean2d = running_mean.reshape(1, D).astype(jnp.float32)
    var2d = running_var.reshape(1, D).astype(jnp.float32)
    count_f = jnp.asarray(count, jnp.float32).reshape(())

    if not update:
        fit_cols = (budget // (per_elem * max(B, 1))) // 128 * 128
        if batch_tile is None and fit_cols >= 128:
            tb_n, tile_n = B, max(128, min(fit_cols, 4096, d128, cap2))
        else:
            tile_n = max(128, min(512, d128, cap2))
            if batch_tile is not None:
                tb_n = int(batch_tile)
            else:
                tb_n = max(8, min((budget // (per_elem * tile_n)) // 8 * 8, _round_up(B, 8)))
        out = _normalize_call(obs, mean2d, var2d, epsilon, tb_n, tile_n, vmem_limit)
        return out, running_mean.astype(jnp.float32), running_var.astype(jnp.float32), count_f

    count1 = count_f.reshape(1)
    fit_cols = (budget // (per_elem * max(B, 1))) // 128 * 128
    use_fused = (batch_tile is None) and (fit_cols >= 128)

    if use_fused:
        # ---- fused single-pass kernel: grid over feature tiles only ----------
        tile_d = max(128, min(fit_cols, 4096, d128, cap2))
        kernel = functools.partial(_rms_fused_kernel, epsilon=float(epsilon), batch_count=B)
        # NOTE: on v7x, pltpu.CORE_PARALLEL on this axis may shard the feature tiles
        # more aggressively than "parallel"; kept portable here.
        out, new_mean, new_var = pl.pallas_call(
            kernel,
            out_shape=(
                jax.ShapeDtypeStruct((B, D), obs.dtype),          # normalized obs
                jax.ShapeDtypeStruct((1, D), jnp.float32),        # new running mean
                jax.ShapeDtypeStruct((1, D), jnp.float32),        # new running var
            ),
            grid=(_cdiv(D, tile_d),),
            in_specs=[
                pl.BlockSpec(memory_space=pltpu.MemorySpace.SMEM),  # count scalar
                pl.BlockSpec((B, tile_d), lambda j: (0, j)),        # obs tile
                pl.BlockSpec((1, tile_d), lambda j: (0, j)),        # running_mean tile
                pl.BlockSpec((1, tile_d), lambda j: (0, j)),        # running_var tile
            ],
            out_specs=(
                pl.BlockSpec((B, tile_d), lambda j: (0, j)),
                pl.BlockSpec((1, tile_d), lambda j: (0, j)),
                pl.BlockSpec((1, tile_d), lambda j: (0, j)),
            ),
            input_output_aliases={2: 1, 3: 2},                     # in-place stat update
            compiler_params=pltpu.CompilerParams(
                dimension_semantics=("parallel",),
                vmem_limit_bytes=vmem_limit),
        )(count1, obs, mean2d, var2d)
    else:
        # ---- batch-tiled fallback: moments pass, then tiled normalize --------
        tile_d = max(128, min(512, d128, cap2))
        if batch_tile is not None:
            tb = max(8, (int(batch_tile) // 8) * 8)
        else:
            tb = max(8, min((budget // (per_elem * tile_d)) // 8 * 8, _round_up(B, 8)))
        tb = min(tb, _round_up(B, 8))
        grid = (_cdiv(D, tile_d), _cdiv(B, tb))

        moments_kernel = functools.partial(_rms_moments_kernel, batch_count=B)
        new_mean, new_var = pl.pallas_call(
            moments_kernel,
            out_shape=(
                jax.ShapeDtypeStruct((1, D), jnp.float32),
                jax.ShapeDtypeStruct((1, D), jnp.float32),
            ),
            grid=grid,
            in_specs=[
                pl.BlockSpec(memory_space=pltpu.MemorySpace.SMEM),
                pl.BlockSpec((tb, tile_d), lambda j, b: (b, j)),
                pl.BlockSpec((1, tile_d), lambda j, b: (0, j)),
                pl.BlockSpec((1, tile_d), lambda j, b: (0, j)),
            ],
            out_specs=(
                pl.BlockSpec((1, tile_d), lambda j, b: (0, j)),
                pl.BlockSpec((1, tile_d), lambda j, b: (0, j)),
            ),
            scratch_shapes=[pltpu.VMEM((1, tile_d), jnp.float32),
                            pltpu.VMEM((1, tile_d), jnp.float32)],
            input_output_aliases={2: 0, 3: 1},
            compiler_params=pltpu.CompilerParams(
                dimension_semantics=("parallel", "arbitrary"),
                vmem_limit_bytes=vmem_limit),
        )(count1, obs, mean2d, var2d)

        out = _normalize_call(obs, new_mean, new_var, epsilon, tb, tile_d, vmem_limit)

    new_count = count_f + jnp.float32(B)
    return out, new_mean[0], new_var[0], new_count


# ----------------------------------------------------------------------------- reference / test
def _reference(obs, mean, var, count, epsilon=1e-8, update=True):
    obs = np.asarray(obs, np.float64)
    mean = np.asarray(mean, np.float64)
    var = np.asarray(var, np.float64)
    count = float(count)
    if update:
        batch_mean = obs.mean(axis=0)
        batch_var = obs.var(axis=0)              # population var (correction=0)
        bc = float(obs.shape[0])
        delta = batch_mean - mean
        tot = count + bc
        mean = mean + delta * bc / tot
        m2 = var * count + batch_var * bc + delta ** 2 * count * bc / tot
        var = m2 / tot
        count = tot
    out = (obs - mean) / np.sqrt(var + epsilon)
    return out, mean, var, count


if __name__ == "__main__":
    key = jax.random.PRNGKey(0)

    def run_case(B, D, **kw):
        k1, k2, k3 = jax.random.split(jax.random.fold_in(key, B * 1009 + D), 3)
        obs = jax.random.normal(k1, (B, D), dtype=jnp.float32) * 2.0 + 0.5
        rm = jax.random.normal(k2, (D,), dtype=jnp.float32) * 0.1
        rv = jax.random.uniform(k3, (D,), dtype=jnp.float32, minval=0.5, maxval=2.0)
        cnt = jnp.ones((), jnp.float32) * 7.0

        out, nm, nv, nc = running_mean_std_forward(obs, rm, rv, cnt, **kw)
        jax.block_until_ready((out, nm, nv, nc))

        upd = kw.get("update", True)
        ro, rmean, rvar, rcount = _reference(obs, rm, rv, 7.0, update=upd)
        np.testing.assert_allclose(np.asarray(out), ro, rtol=1e-4, atol=1e-4)
        np.testing.assert_allclose(np.asarray(nm), rmean, rtol=1e-4, atol=1e-4)
        np.testing.assert_allclose(np.asarray(nv), rvar, rtol=1e-4, atol=1e-4)
        np.testing.assert_allclose(float(np.asarray(nc)), rcount, rtol=1e-5, atol=1e-5)

    # Fused path, single (ragged) feature tile — typical small RL obs dims.
    run_case(8, 32)
    # Fused path, multiple feature tiles with a ragged last tile (no wrapper pad/slice).
    run_case(8, 200)
    # Batch-tiled fallback (large-B robustness path): ragged batch + feature tiles.
    run_case(20, 200, vmem_budget_bytes=1 << 20, batch_tile=8)
    # update=False path (normalize with existing stats only).
    run_case(8, 32, update=False)

    print("KERNEL_OK")
</pallas_src>

<mosaic_0001>
module attributes {stable_mosaic.version = 11 : i64} {
  func.func @_rms_fused_kernel(%arg0: i32, %arg1: memref<1xf32, #tpu.memory_space<smem>>, %arg2: memref<8x128xf32, #tpu.memory_space<vmem>>, %arg3: memref<1x128xf32, #tpu.memory_space<vmem>>, %arg4: memref<1x128xf32, #tpu.memory_space<vmem>>, %arg5: memref<8x128xf32, #tpu.memory_space<vmem>>, %arg6: memref<1x128xf32, #tpu.memory_space<vmem>>, %arg7: memref<1x128xf32, #tpu.memory_space<vmem>>) attributes {dimension_semantics = [#tpu.dimension_semantics<parallel>], iteration_bounds = array<i64: 1>, scalar_prefetch = 0 : i64, scratch_operands = 0 : i64, tpu.core_type = #tpu.core_type<tc>, window_params = [{transform_indices = @transform_0, window_bounds = array<i64: 1>}, {transform_indices = @transform_1, window_bounds = array<i64: 8, 128>}, {transform_indices = @transform_2, window_bounds = array<i64: 1, 128>}, {transform_indices = @transform_3, window_bounds = array<i64: 1, 128>}, {transform_indices = @transform_4, window_bounds = array<i64: 8, 128>}, {transform_indices = @transform_5, window_bounds = array<i64: 1, 128>}, {transform_indices = @transform_6, window_bounds = array<i64: 1, 128>}]} {
    %c0 = arith.constant 0 : index
    %0 = memref.load %arg1[%c0] : memref<1xf32, #tpu.memory_space<smem>>
    %cst = arith.constant 8.000000e+00 : f32
    %1 = arith.addf %0, %cst : f32
    %cst_0 = arith.constant 1.000000e+00 : f32
    %2 = arith.divf %cst_0, %1 : f32
    %cst_1 = arith.constant 8.000000e+00 : f32
    %3 = arith.mulf %cst_1, %2 : f32
    %cst_2 = arith.constant 8.000000e+00 : f32
    %4 = arith.mulf %0, %cst_2 : f32
    %5 = arith.mulf %4, %2 : f32
    %c0_3 = arith.constant 0 : index
    %c0_4 = arith.constant 0 : index
    %6 = vector.load %arg2[%c0_3, %c0_4] : memref<8x128xf32, #tpu.memory_space<vmem>>, vector<8x128xf32>
    %c0_5 = arith.constant 0 : index
    %c0_6 = arith.constant 0 : index
    %7 = vector.load %arg3[%c0_5, %c0_6] : memref<1x128xf32, #tpu.memory_space<vmem>>, vector<1x128xf32>
    %c0_7 = arith.constant 0 : index
    %c0_8 = arith.constant 0 : index
    %8 = vector.load %arg4[%c0_7, %c0_8] : memref<1x128xf32, #tpu.memory_space<vmem>>, vector<1x128xf32>
    %cst_9 = arith.constant dense<0.000000e+00> : vector<128xf32>
    %9 = vector.multi_reduction <add>, %6, %cst_9 [0] : vector<8x128xf32> to vector<128xf32>
    %10 = vector.shape_cast %9 : vector<128xf32> to vector<1x128xf32>
    %cst_10 = arith.constant 8.000000e+00 : f32
    %11 = vector.broadcast %cst_10 : f32 to vector<1x128xf32>
    %12 = arith.divf %10, %11 : vector<1x128xf32>
    %13 = vector.broadcast %12 : vector<1x128xf32> to vector<8x128xf32>
    %14 = arith.subf %6, %13 : vector<8x128xf32>
    %15 = arith.mulf %14, %14 : vector<8x128xf32>
    %cst_11 = arith.constant dense<0.000000e+00> : vector<128xf32>
    %16 = vector.multi_reduction <add>, %15, %cst_11 [0] : vector<8x128xf32> to vector<128xf32>
    %17 = vector.shape_cast %16 : vector<128xf32> to vector<1x128xf32>
    %cst_12 = arith.constant 8.000000e+00 : f32
    %18 = vector.broadcast %cst_12 : f32 to vector<1x128xf32>
    %19 = arith.divf %17, %18 : vector<1x128xf32>
    %20 = arith.subf %12, %7 : vector<1x128xf32>
    %21 = vector.broadcast %3 : f32 to vector<1x128xf32>
    %22 = arith.mulf %20, %21 : vector<1x128xf32>
    %23 = arith.addf %7, %22 : vector<1x128xf32>
    %24 = vector.broadcast %0 : f32 to vector<1x128xf32>
    %25 = arith.mulf %8, %24 : vector<1x128xf32>
    %cst_13 = arith.constant 8.000000e+00 : f32
    %26 = vector.broadcast %cst_13 : f32 to vector<1x128xf32>
    %27 = arith.mulf %19, %26 : vector<1x128xf32>
    %28 = arith.addf %25, %27 : vector<1x128xf32>
    %29 = arith.mulf %20, %20 : vector<1x128xf32>
    %30 = vector.broadcast %5 : f32 to vector<1x128xf32>
    %31 = arith.mulf %29, %30 : vector<1x128xf32>
    %32 = arith.addf %28, %31 : vector<1x128xf32>
    %33 = vector.broadcast %2 : f32 to vector<1x128xf32>
    %34 = arith.mulf %32, %33 : vector<1x128xf32>
    %c0_14 = arith.constant 0 : index
    %c0_15 = arith.constant 0 : index
    %35 = vector.load %arg6[%c0_14, %c0_15] : memref<1x128xf32, #tpu.memory_space<vmem>>, vector<1x128xf32>
    tpu.vector_store %arg6[%c0_14, %c0_15], %23 {strides = array<i32>} : memref<1x128xf32, #tpu.memory_space<vmem>>, vector<1x128xf32>,
    %c0_16 = arith.constant 0 : index
    %c0_17 = arith.constant 0 : index
    %36 = vector.load %arg7[%c0_16, %c0_17] : memref<1x128xf32, #tpu.memory_space<vmem>>, vector<1x128xf32>
    tpu.vector_store %arg7[%c0_16, %c0_17], %34 {strides = array<i32>} : memref<1x128xf32, #tpu.memory_space<vmem>>, vector<1x128xf32>,
    %cst_18 = arith.constant 9.99999993E-9 : f32
    %37 = vector.broadcast %cst_18 : f32 to vector<1x128xf32>
    %38 = arith.addf %34, %37 : vector<1x128xf32>
    %39 = math.rsqrt %38 : vector<1x128xf32>
    %40 = vector.broadcast %23 : vector<1x128xf32> to vector<8x128xf32>
    %41 = arith.subf %6, %40 : vector<8x128xf32>
    %42 = vector.broadcast %39 : vector<1x128xf32> to vector<8x128xf32>
    %43 = arith.mulf %41, %42 : vector<8x128xf32>
    %c0_19 = arith.constant 0 : index
    %c0_20 = arith.constant 0 : index
    %44 = vector.load %arg5[%c0_19, %c0_20] : memref<8x128xf32, #tpu.memory_space<vmem>>, vector<8x128xf32>
    tpu.vector_store %arg5[%c0_19, %c0_20], %43 {strides = array<i32>} : memref<8x128xf32, #tpu.memory_space<vmem>>, vector<8x128xf32>,
    return
  }
  func.func @transform_0(%arg0: i32) -> i32 {
    %c0_i32 = arith.constant 0 : i32
    %c0_i32_0 = arith.constant 0 : i32
    return %c0_i32 : i32
  }
  func.func @transform_1(%arg0: i32) -> (i32, i32) {
    %c0_i32 = arith.constant 0 : i32
    %c0_i32_0 = arith.constant 0 : i32
    return %c0_i32, %arg0 : i32, i32
  }
  func.func @transform_2(%arg0: i32) -> (i32, i32) {
    %c0_i32 = arith.constant 0 : i32
    %c0_i32_0 = arith.constant 0 : i32
    return %c0_i32, %arg0 : i32, i32
  }
  func.func @transform_3(%arg0: i32) -> (i32, i32) {
    %c0_i32 = arith.constant 0 : i32
    %c0_i32_0 = arith.constant 0 : i32
    return %c0_i32, %arg0 : i32, i32
  }
  func.func @transform_4(%arg0: i32) -> (i32, i32) {
    %c0_i32 = arith.constant 0 : i32
    %c0_i32_0 = arith.constant 0 : i32
    return %c0_i32, %arg0 : i32, i32
  }
  func.func @transform_5(%arg0: i32) -> (i32, i32) {
    %c0_i32 = arith.constant 0 : i32
    %c0_i32_0 = arith.constant 0 : i32
    return %c0_i32, %arg0 : i32, i32
  }
  func.func @transform_6(%arg0: i32) -> (i32, i32) {
    %c0_i32 = arith.constant 0 : i32
    %c0_i32_0 = arith.constant 0 : i32
    return %c0_i32, %arg0 : i32, i32
  }
}

</mosaic_0001>

<llo_original>
// kernel: running_mean_std_forward.1
$region0: #{running_mean_std_forward.1}
  #allocation0 [shape = 'u32[]', space=smem, size = 0x4, offset = 0x4, fixed_abs, tag = 'smem constant byte address 0x4 - core index']
  #allocation1 [shape = 'u32[144,128]{1,0:T(1,128)}', space=vmem, size = 0x12000, scoped, tag = 'internal scratch']
  #allocation2 [shape = 'f32[1]{0:T(128)S(6)}', space=smem, size = 0x200, scoped, tag = 'scoped memory for running_mean_std_forward.1']
  %s0 = inlined_call_operand.<no memory space> [shape: f32[1], index: 0, kind: input, shape index: {}]
  %s1 = inlined_call_operand.vmem [shape: f32[8,32], index: 1, kind: input, shape index: {}]
  %s2 = inlined_call_operand.vmem [shape: f32[1,32], index: 2, kind: input, shape index: {}, may-alias: {2,5}]
  %s3 = inlined_call_operand.vmem [shape: f32[1,32], index: 3, kind: input, shape index: {}, may-alias: {3,6}]
  %s4 = inlined_call_operand.hbm [shape: f32[8,32], index: 4, kind: output, shape index: {0}]
  %s5 = inlined_call_operand.vmem [shape: f32[1,32], index: 5, kind: output, shape index: {1}, may-alias: {2,5}]
  %s6 = inlined_call_operand.vmem [shape: f32[1,32], index: 6, kind: output, shape index: {2}, may-alias: {3,6}]
  %7 = xla_tuple %s4, %s5, %s6
  %s8 = sld [smem:[#allocation0]]
  $region42: #{running_mean_std_forward.1} parent=0
    _
  %s10 = ssub.s32 1, %s8
  %s11 = scalar_select 0, %s10, %s8
  %12 = sst [smem:[#allocation2]] %s0
  $region1: #{running_mean_std_forward.1} parent=0
    #allocation3 [shape = 'u8[4096]{0}', space=vmem, size = 0x1000, scoped, tag = 'output window, operand 0, single buffered']
    #allocation4 [shape = 's32[1]{0}', space=sflag, size = 0x4, scoped, tag = 'scoped memory for running_mean_std_forward.1']
    %13 = vsyncpa [#allocation4], 0
    // Predicated region
    $region2: #{running_mean_std_forward.1} parent=1 // pred_check
      _
    $region3: #{running_mean_std_forward.1} parent=1 // pred_check_branch
      %15 = sbr.rel (0) target = $region5
    $region4: #{running_mean_std_forward.1} parent=1 // pred_region
      _
    $region5: #{running_mean_std_forward.1} parent=1 // pred_fallthru
      _
    // Predicated region
    $region6: #{running_mean_std_forward.1} parent=1 // pred_check
      _
    $region7: #{running_mean_std_forward.1} parent=1 // pred_check_branch
      %17 = sbr.rel (0) target = $region9
    $region8: #{running_mean_std_forward.1} parent=1 // pred_region
      _
    $region9: #{running_mean_std_forward.1} parent=1 // pred_fallthru
      _
    // Predicated region
    $region10: #{running_mean_std_forward.1} parent=1 // pred_check
      _
    $region11: #{running_mean_std_forward.1} parent=1 // pred_check_branch
      %19 = sbr.rel (0) target = $region13
    $region12: #{running_mean_std_forward.1} parent=1 // pred_region
      _
    $region13: #{running_mean_std_forward.1} parent=1 // pred_fallthru
      _
    // Predicated region
    $region14: #{running_mean_std_forward.1} parent=1 // pred_check
      _
    $region15: #{running_mean_std_forward.1} parent=1 // pred_check_branch
      %21 = sbr.rel (0) target = $region17
    $region16: #{running_mean_std_forward.1} parent=1 // pred_region
      _
    $region17: #{running_mean_std_forward.1} parent=1 // pred_fallthru
      _
    %s22 = sld [smem:[#allocation2]]
    %s23 = sadd.f32 %s22, 8.0
    %v24 = vstv %s23
    %v25 = vrcp.pop %v24
    %s26 = vtos %v25
    %s27 = smul.f32 %s26, 8.0
    %s28 = smul.f32 %s22, 8.0
    %s29 = smul.f32 %s28, %s26
    %v30 = vld [vmem:[%s1] sm:$0xff]
    %v31 = vld [vmem:[%s2] sm:$0x1]
    %v32 = vld [vmem:[%s3] sm:$0x1]
    %v33 = vrot.slane %v30, 4
    %v34 = vadd.f32 %v30, %v33
    %v35 = vrot.slane %v34, 2
    %v36 = vadd.f32 %v34, %v35
    %v37 = vrot.slane %v36, 1
    %v38 = vadd.f32 %v36, %v37
    %v39 = vrcp.pop 8.0
    %v40 = vmul.f32 %v38, %v39
    %v41 = vsub.f32 %v30, %v40
    %v42 = vmul.f32 %v41, %v41
    %v43 = vrot.slane %v42, 4
    %v44 = vadd.f32 %v42, %v43
    %v45 = vrot.slane %v44, 2
    %v46 = vadd.f32 %v44, %v45
    %v47 = vrot.slane %v46, 1
    %v48 = vadd.f32 %v46, %v47
    %v49 = vmul.f32 %v48, %v39
    %v50 = vsub.f32 %v40, %v31
    %v51 = vstv %s27
    %v52 = vmul.f32 %v50, %v51
    %v53 = vadd.f32 %v31, %v52
    %v54 = vstv %s22
    %v55 = vmul.f32 %v32, %v54
    %v56 = vmul.f32 %v49, 8.0
    %v57 = vadd.f32 %v55, %v56
    %v58 = vmul.f32 %v50, %v50
    %v59 = vstv %s29
    %v60 = vmul.f32 %v58, %v59
    %v61 = vadd.f32 %v57, %v60
    %v62 = vstv %s26
    %v63 = vmul.f32 %v61, %v62
    %64 = vst [vmem:[%s5] sm:$0x1] %v53
    %65 = vst [vmem:[%s6] sm:$0x1] %v63
    %v66 = vadd.f32 %v63, 1e-08
    %v67 = vrsqrt.pop %v66
    %v69 = vlaneseq
    %v70 = vshrl.u32 %v69, 7
    %v71 = vsub.s32 0, %v70
    %v72 = vrot.slane %v53, %v71
    %v74 = vsub.f32 %v30, %v72
    %v76 = vlaneseq
    %v77 = vshrl.u32 %v76, 7
    %v78 = vsub.s32 0, %v77
    %v79 = vrot.slane %v67, %v78
    %v81 = vmul.f32 %v74, %v79
    %82 = vst [vmem:[#allocation3] sm:$0xff] %v81
    // Predicated region
    $region18: #{running_mean_std_forward.1} parent=1 // pred_check
      _
    $region19: #{running_mean_std_forward.1} parent=1 // pred_check_branch
      %84 = sbr.rel (0) target = $region21
    $region20: #{running_mean_std_forward.1} parent=1 // pred_region
      %s86 = ssub.s32 128, 128
      %87 = vsyncadd [#allocation4], %s86
      %s89 = sshll.u32 [#allocation3], 4
      %s90 = int_to_ptr.vmem [resolvable:$true] %s89
      %92 = dma.vmem_to_hbm [thread:$0]  %s90, 128, %s4, [#allocation4]
    $region21: #{running_mean_std_forward.1} parent=1 // pred_fallthru
      _
    // Predicated region
    $region22: #{running_mean_std_forward.1} parent=1 // pred_check
      _
    $region23: #{running_mean_std_forward.1} parent=1 // pred_check_branch
      %94 = sbr.rel (0) target = $region25
    $region24: #{running_mean_std_forward.1} parent=1 // pred_region
      _
    $region25: #{running_mean_std_forward.1} parent=1 // pred_fallthru
      _
    // Predicated region
    $region26: #{running_mean_std_forward.1} parent=1 // pred_check
      _
    $region27: #{running_mean_std_forward.1} parent=1 // pred_check_branch
      %96 = sbr.rel (0) target = $region29
    $region28: #{running_mean_std_forward.1} parent=1 // pred_region
      _
    $region29: #{running_mean_std_forward.1} parent=1 // pred_fallthru
      _
    // Predicated region
    $region30: #{running_mean_std_forward.1} parent=1 // pred_check
      _
    $region31: #{running_mean_std_forward.1} parent=1 // pred_check_branch
      %98 = sbr.rel (0) target = $region33
    $region32: #{running_mean_std_forward.1} parent=1 // pred_region
      %99 = dma.done [#allocation4], 128
    $region33: #{running_mean_std_forward.1} parent=1 // pred_fallthru
      _
    // Predicated region
    $region34: #{running_mean_std_forward.1} parent=1 // pred_check
      _
    $region35: #{running_mean_std_forward.1} parent=1 // pred_check_branch
      %101 = sbr.rel (0) target = $region37
    $region36: #{running_mean_std_forward.1} parent=1 // pred_region
      _
    $region37: #{running_mean_std_forward.1} parent=1 // pred_fallthru
      _
    // Predicated region
    $region38: #{running_mean_std_forward.1} parent=1 // pred_check
      _
    $region39: #{running_mean_std_forward.1} parent=1 // pred_check_branch
      %103 = sbr.rel (0) target = $region41
    $region40: #{running_mean_std_forward.1} parent=1 // pred_region
      _
    $region41: #{running_mean_std_forward.1} parent=1 // pred_fallthru
      _
    %104 = vsyncpa [#allocation4], 1

</llo_original>
